<compile_context>
chip_gen: v6e
topology: v6e:2x2x1
jax: 0.10.0
libtpu: 0.0.40
codegen_flags: <defaults>
</compile_context>

<pallas_src>
import jax
import jax.numpy as jnp
from jax.experimental import pallas as pl
from jax.experimental.pallas import tpu as pltpu


def _touch_kernel(x_ref, o_ref):
    # Zero data movement: the output buffer IS the input buffer
    # (input_output_aliases={0: 0}).  touch() just pins a read+write
    # dependency so the aliased output is considered produced by this kernel.
    del x_ref
    pltpu.touch(o_ref)


def _copy_kernel(x_ref, o_ref, sem):
    # Fallback: one whole-array HBM -> HBM DMA (same shape on both sides, so
    # the copy is a contiguous byte copy at the HBM roofline -- no retiling).
    cp = pltpu.make_async_copy(x_ref, o_ref, sem)
    cp.start()
    cp.wait()


def _passthrough_identity(x: jax.Array) -> jax.Array:
    """Route x through a Pallas call that returns it unchanged (same shape)."""
    out_shape = jax.ShapeDtypeStruct(x.shape, x.dtype)
    try:
        # Primary: zero-copy aliased identity (0 bytes of HBM traffic).
        return pl.pallas_call(
            _touch_kernel,
            out_shape=out_shape,
            in_specs=[pl.BlockSpec(memory_space=pl.ANY)],
            out_specs=pl.BlockSpec(memory_space=pl.ANY),
            input_output_aliases={0: 0},
        )(x)
    except Exception:
        # Fallback: single-descriptor HBM->HBM copy (known-good lowering).
        return pl.pallas_call(
            _copy_kernel,
            out_shape=out_shape,
            in_specs=[pl.BlockSpec(memory_space=pl.ANY)],
            out_specs=pl.BlockSpec(memory_space=pl.ANY),
            scratch_shapes=[pltpu.SemaphoreType.DMA(())],
        )(x)


def squeeze_pallas(x: jax.Array, dim: int) -> jax.Array:
    """Equivalent of torch.Tensor.squeeze(dim) for an arbitrary-rank input."""
    ndim = x.ndim
    if dim < 0:
        dim += ndim
    assert 0 <= dim < ndim, f"dim {dim} out of range for rank-{ndim} input"

    # torch.squeeze(dim) is a no-op when that dim is not size 1.
    if x.shape[dim] != 1:
        return x

    # Pallas passthrough (zero-copy via aliasing), then the metadata-only
    # rank collapse outside the kernel.
    y = _passthrough_identity(x)
    return jnp.squeeze(y, axis=dim)


if __name__ == "__main__":
    key = jax.random.PRNGKey(0)

    # Main case: NCHW-like input with a size-1 channel dim: (B=2, C=1, H=16, W=128).
    x = jax.random.normal(key, (2, 1, 16, 128), dtype=jnp.float32)
    dim = 1
    out = squeeze_pallas(x, dim)
    out = jax.block_until_ready(out)
    ref = jnp.squeeze(x, axis=dim)
    assert out.shape == ref.shape, (out.shape, ref.shape)
    assert out.dtype == ref.dtype
    assert bool(jnp.array_equal(out, ref))

    # Minor-dim squeeze (last, lane-tiled dim): layout-safe because the kernel
    # preserves the input shape and the collapse happens outside the kernel.
    z = jax.random.normal(key, (2, 16, 128, 1), dtype=jnp.float32)
    out_z = jax.block_until_ready(squeeze_pallas(z, -1))
    ref_z = jnp.squeeze(z, axis=-1)
    assert out_z.shape == ref_z.shape
    assert bool(jnp.array_equal(out_z, ref_z))

    # No-op path (dim is not size 1): must return the input unchanged.
    y = jax.random.normal(key, (2, 4, 16, 128), dtype=jnp.float32)
    out2 = squeeze_pallas(y, 1)
    assert out2.shape == y.shape
    assert bool(jnp.array_equal(out2, y))

    print("KERNEL_OK")
</pallas_src>

<mosaic_0001>
module attributes {stable_mosaic.version = 11 : i64} {
  func.func @_touch_kernel(%arg0: memref<2x1x16x128xf32, #tpu.memory_space<any>>, %arg1: memref<2x1x16x128xf32, #tpu.memory_space<any>>) attributes {dimension_semantics = [], scalar_prefetch = 0 : i64, scratch_operands = 0 : i64, tpu.core_type = #tpu.core_type<tc>} {
    return
  }
}

module attributes {stable_mosaic.version = 11 : i64} {
  func.func @_copy_kernel(%arg0: memref<2x1x16x128xf32, #tpu.memory_space<any>>, %arg1: memref<2x1x16x128xf32, #tpu.memory_space<any>>, %arg2: memref<!tpu.dma_semaphore, #tpu.memory_space<semaphore_mem>>) attributes {dimension_semantics = [], scalar_prefetch = 0 : i64, scratch_operands = 1 : i64, tpu.core_type = #tpu.core_type<tc>} {
    tpu.enqueue_dma source(%arg0 : memref<2x1x16x128xf32, #tpu.memory_space<any>>) target(%arg1 : memref<2x1x16x128xf32, #tpu.memory_space<any>>) target_semaphore(%arg2 : memref<!tpu.dma_semaphore, #tpu.memory_space<semaphore_mem>>)
    tpu.wait_dma2 semaphore(%arg2 : memref<!tpu.dma_semaphore, #tpu.memory_space<semaphore_mem>>) src(%arg0 : memref<2x1x16x128xf32, #tpu.memory_space<any>>) dst(%arg1 : memref<2x1x16x128xf32, #tpu.memory_space<any>>)
    return
  }
}

</mosaic_0001>

<llo_original>
// kernel: tpu_custom_call.1
$region0: #{tpu_custom_call.1}
  #allocation0 [shape = 'u32[]', space=smem, size = 0x4, offset = 0x4, fixed_abs, tag = 'smem constant byte address 0x4 - core index']
  #allocation1 [shape = 'u32[144,128]{1,0:T(1,128)}', space=vmem, size = 0x12000, scoped, tag = 'internal scratch']
  %s0 = inlined_call_operand.hbm [shape: f32[2,1,16,128], index: 0, kind: input, shape index: {}, may-alias: {0,1}]
  %s1 = inlined_call_operand.hbm [shape: f32[2,1,16,128], index: 1, kind: output, shape index: {}, may-alias: {0,1}]
  %s2 = sld [smem:[#allocation0]]
  $region2: #{tpu_custom_call.1} parent=0
    _
  %s4 = ssub.s32 1, %s2
  %s5 = scalar_select 0, %s4, %s2

// kernel: tpu_custom_call.1
$region0: #{tpu_custom_call.1}
  #allocation0 [shape = 'u32[]', space=smem, size = 0x4, offset = 0x4, fixed_abs, tag = 'smem constant byte address 0x4 - core index']
  #allocation1 [shape = 'u32[144,128]{1,0:T(1,128)}', space=vmem, size = 0x12000, scoped, tag = 'internal scratch']
  #allocation2 [shape = 's32[1]{0}', space=sflag, size = 0x4, scoped, tag = 'scratch operand']
  #allocation3 [shape = 's32[]', space=sflag, size = 0x4, offset = 0, fixed_abs, tag = 'sflag constant byte address 0x0 - dummy sync flag']
  #allocation4 [shape = 'u32[0]{0}', space=smem, size = 0, offset = 0, fixed_abs, tag = 'smem constant byte address 0x0 - null']
  %s0 = inlined_call_operand.hbm [shape: f32[2,1,16,128], index: 0, kind: input, shape index: {}]
  %s1 = inlined_call_operand.hbm [shape: f32[2,1,16,128], index: 1, kind: output, shape index: {}]
  %s2 = sld [smem:[#allocation0]]
  $region2: #{tpu_custom_call.1} parent=0
    _
  %s4 = ssub.s32 1, %s2
  %s5 = scalar_select 0, %s4, %s2
  %s7 = sshll.u32 1, 14
  %s8 = sxor.u32 4294967295, %s7
  %12 = dma.general %s0, 512, %s1, [#allocation2], 131072, [#allocation4], 0, 0
  %s13 = smul.u32 2, 1
  %s14 = smul.u32 %s13, 16
  %s15 = smul.u32 %s14, 1
  %s16 = sshll.u32 %s15, 4
  %17 = dma.done [#allocation2], %s16
  %18 = vsyncmov [#allocation2]
  %s19 = vpop.sfrf %18
  %p20 = scmp.eq.s32.totalorder %s19, 0
  %p21 = pneg %p20
  %23 = shalt.err (%p21)

</llo_original>
